<compile_context>
chip_gen: v6e
topology: v6e:2x2x1
jax: 0.10.0
libtpu: 0.0.40
codegen_flags: <defaults>
</compile_context>

<pallas_src>
import functools

import jax
import jax.numpy as jnp
from jax.experimental import pallas as pl
from jax.experimental.pallas import tpu as pltpu

_LANE = 128


def _round_up(x, m):
    return ((x + m - 1) // m) * m


def time_embedding_kernel(t_ref, c_ref, w1t_ref, w2t_ref, o_ref, *, half_dim, dim):
    # t_ref:   (1, TB) f32        -- timesteps, batch on the lane axis
    # c_ref:   (4*dim, 1) f32     -- rows [0:dim] = emb duplicated, [dim:3*dim] = b1,
    #                                [3*dim:4*dim] = b2 (column vectors for broadcasting)
    # w1t_ref: (2*dim, dim)       -- projection1 weight, (out, in) layout
    # w2t_ref: (dim, 2*dim)       -- projection2 weight, (out, in) layout
    # o_ref:   (dim, TB) f32      -- out^T, lane-dense when TB is a multiple of 128
    t = t_ref[...]                                   # (1, TB)
    emb2 = c_ref[0:dim, :]                           # (dim, 1)   emb duplicated twice
    b1 = c_ref[dim:3 * dim, :]                       # (2*dim, 1)
    b2 = c_ref[3 * dim:4 * dim, :]                   # (dim, 1)

    phase = emb2 * t                                 # (dim, TB)
    row = jax.lax.broadcasted_iota(jnp.int32, phase.shape, 0)
    # rows [0:half_dim] -> sin, rows [half_dim:dim] -> cos  (== concat([sin, cos]) ^T)
    x = jnp.where(row < half_dim, jnp.sin(phase), jnp.cos(phase))   # (dim, TB)

    w_dt = w1t_ref.dtype
    # projection1: single fused MXU matmul (K = dim), f32 accumulation.
    h = jnp.dot(w1t_ref[...], x.astype(w_dt),
                preferred_element_type=jnp.float32) + b1            # (2*dim, TB)
    h = h * jax.nn.sigmoid(h)                                       # SiLU (f32)
    # projection2.
    out = jnp.dot(w2t_ref[...], h.astype(w2t_ref.dtype),
                  preferred_element_type=jnp.float32) + b2          # (dim, TB)
    o_ref[...] = out.astype(o_ref.dtype)


def pack_time_embedding_params(emb, w1, b1, w2, b2, *, weight_dtype=jnp.float32):
    """Pack parameters ONCE at init time (hoisted off the per-step path).

    emb: (half_dim,), w1: (dim, 2*dim) [x @ w1 layout], b1: (2*dim,),
    w2: (2*dim, dim), b2: (dim,).
    Returns (consts, w1_t, w2_t) for time_embedding().
    """
    half_dim = emb.shape[0]
    dim = 2 * half_dim
    assert w1.shape == (dim, 2 * dim) and w2.shape == (2 * dim, dim)
    assert b1.shape == (2 * dim,) and b2.shape == (dim,)
    emb32 = emb.astype(jnp.float32)
    consts = jnp.concatenate(
        [emb32, emb32,                    # duplicated: phase computed at full dim width
         b1.astype(jnp.float32),
         b2.astype(jnp.float32)]).reshape(4 * dim, 1)
    w1_t = jnp.asarray(w1).T.astype(weight_dtype)   # (2*dim, dim)
    w2_t = jnp.asarray(w2).T.astype(weight_dtype)   # (dim, 2*dim)
    return consts, w1_t, w2_t


def time_embedding(t, consts, w1_t, w2_t, *, max_block_b=512):
    """t: (B,) timesteps; returns (B, dim) float32 (PyTorch TimeEmbedding.forward)."""
    B = t.shape[0]
    dim = w2_t.shape[0]
    half_dim = dim // 2
    assert dim % 2 == 0
    assert w1_t.shape == (2 * dim, dim) and w2_t.shape == (dim, 2 * dim)
    assert consts.shape == (4 * dim, 1)

    # Batch tile along the LANE axis.
    B8 = _round_up(B, 8)
    if B8 <= _LANE:
        TB = B8                                   # single grid step; block == full array
    else:
        bp_lane = _round_up(B, _LANE)
        TB = min(_round_up(max_block_b, _LANE), bp_lane)
        # v7x megacore: keep >= 2 grid steps so both TensorCores get work.
        if bp_lane >= 2 * _LANE:
            TB = min(TB, _round_up(bp_lane // 2, _LANE))
    Bp = _round_up(B, TB)

    t_row = t.astype(jnp.float32).reshape(1, B)
    if Bp != B:
        t_row = jnp.pad(t_row, ((0, 0), (0, Bp - B)))   # padded cols compute sin(0)/cos(1)

    wbytes = (w1_t.size * w1_t.dtype.itemsize
              + w2_t.size * w2_t.dtype.itemsize
              + consts.size * consts.dtype.itemsize)
    cost = pl.CostEstimate(
        flops=2 * Bp * (2 * dim * dim) * 2,        # two (dim x 2dim) matmuls over Bp rows
        transcendentals=4 * Bp * dim,              # sin + cos (full width) + sigmoid
        bytes_accessed=wbytes + Bp * 4 + Bp * dim * 4,
    )

    out_t = pl.pallas_call(
        functools.partial(time_embedding_kernel, half_dim=half_dim, dim=dim),
        out_shape=jax.ShapeDtypeStruct((dim, Bp), jnp.float32),
        grid=(Bp // TB,),
        in_specs=[
            pl.BlockSpec((1, TB), lambda i: (0, i)),           # t: pipelined, lane-major
            pl.BlockSpec((4 * dim, 1), lambda i: (0, 0)),      # consts: VMEM-resident
            pl.BlockSpec((2 * dim, dim), lambda i: (0, 0)),    # w1^T: VMEM-resident
            pl.BlockSpec((dim, 2 * dim), lambda i: (0, 0)),    # w2^T: VMEM-resident
        ],
        out_specs=pl.BlockSpec((dim, TB), lambda i: (0, i)),   # out^T: lane-dense tiles
        compiler_params=pltpu.CompilerParams(
            dimension_semantics=("parallel",)),
        cost_estimate=cost,
    )(t_row, consts, w1_t, w2_t)
    # Layout plumbing only: a fused consumer could take out^T directly.
    return out_t[:, :B].T


def reference_time_embedding(t, emb, w1, b1, w2, b2):
    t = t.astype(jnp.float32)[:, None]
    phase = t * emb[None, :]
    x = jnp.concatenate([jnp.sin(phase), jnp.cos(phase)], axis=-1)
    h = x @ w1 + b1
    h = jax.nn.silu(h)
    return h @ w2 + b2


if __name__ == "__main__":
    dim = 32
    half_dim = dim // 2
    B = 8

    # Buffer 'emb' exactly as in the PyTorch __init__.
    emb_scale = jnp.log(jnp.float32(10000.0)) / (half_dim - 1)
    emb = jnp.exp(jnp.arange(half_dim, dtype=jnp.float32) * -emb_scale)

    # Deterministic parameter init (synthetic; nn.Linear shapes, pre-transposed to x@W).
    key = jax.random.PRNGKey(0)
    k1, k2, k3, k4, k5 = jax.random.split(key, 5)
    w1 = jax.random.normal(k1, (dim, dim * 2), jnp.float32) * (1.0 / jnp.sqrt(dim))
    b1 = jax.random.normal(k2, (dim * 2,), jnp.float32) * 0.01
    w2 = jax.random.normal(k3, (dim * 2, dim), jnp.float32) * (1.0 / jnp.sqrt(dim * 2))
    b2 = jax.random.normal(k4, (dim,), jnp.float32) * 0.01

    # Pack params once (hoisted out of the per-step path).
    consts, w1_t, w2_t = pack_time_embedding_params(emb, w1, b1, w2, b2)
    consts, w1_t, w2_t = jax.block_until_ready((consts, w1_t, w2_t))

    # Small-batch path (single grid step).
    t_small = jax.random.randint(k5, (B,), 0, 1000).astype(jnp.float32)
    out = jax.block_until_ready(time_embedding(t_small, consts, w1_t, w2_t))
    ref = reference_time_embedding(t_small, emb, w1, b1, w2, b2)
    assert out.shape == (B, dim), out.shape
    assert jnp.allclose(out, ref, atol=1e-4, rtol=1e-4), float(jnp.max(jnp.abs(out - ref)))

    # Larger batch: exercises multi-step grid, lane-dense 128-multiple tiles, padded tail.
    B2 = 300
    t_big = jax.random.randint(jax.random.PRNGKey(1), (B2,), 0, 1000).astype(jnp.float32)
    out2 = jax.block_until_ready(time_embedding(t_big, consts, w1_t, w2_t))
    ref2 = reference_time_embedding(t_big, emb, w1, b1, w2, b2)
    assert out2.shape == (B2, dim), out2.shape
    assert jnp.allclose(out2, ref2, atol=1e-4, rtol=1e-4), float(jnp.max(jnp.abs(out2 - ref2)))

    print("KERNEL_OK")
</pallas_src>

<mosaic_0001>
module attributes {stable_mosaic.version = 11 : i64} {
  func.func @time_embedding_kernel(%arg0: i32, %arg1: memref<1x8xf32, #tpu.memory_space<vmem>>, %arg2: memref<128x1xf32, #tpu.memory_space<vmem>>, %arg3: memref<64x32xf32, #tpu.memory_space<vmem>>, %arg4: memref<32x64xf32, #tpu.memory_space<vmem>>, %arg5: memref<32x8xf32, #tpu.memory_space<vmem>>) attributes {dimension_semantics = [#tpu.dimension_semantics<parallel>], iteration_bounds = array<i64: 1>, scalar_prefetch = 0 : i64, scratch_operands = 0 : i64, tpu.core_type = #tpu.core_type<tc>, window_params = [{transform_indices = @transform_0, window_bounds = array<i64: 1, 8>}, {pipeline_mode = #tpu.pipeline_mode<synchronous>, transform_indices = @transform_1, window_bounds = array<i64: 128, 1>}, {pipeline_mode = #tpu.pipeline_mode<synchronous>, transform_indices = @transform_2, window_bounds = array<i64: 64, 32>}, {pipeline_mode = #tpu.pipeline_mode<synchronous>, transform_indices = @transform_3, window_bounds = array<i64: 32, 64>}, {transform_indices = @transform_4, window_bounds = array<i64: 32, 8>}]} {
    %c0 = arith.constant 0 : index
    %c0_0 = arith.constant 0 : index
    %0 = vector.load %arg1[%c0, %c0_0] : memref<1x8xf32, #tpu.memory_space<vmem>>, vector<1x8xf32>
    %c0_1 = arith.constant 0 : index
    %c0_2 = arith.constant 0 : index
    %1 = vector.load %arg2[%c0_1, %c0_2] : memref<128x1xf32, #tpu.memory_space<vmem>>, vector<32x1xf32>
    %c32 = arith.constant 32 : index
    %c0_3 = arith.constant 0 : index
    %2 = vector.load %arg2[%c32, %c0_3] : memref<128x1xf32, #tpu.memory_space<vmem>>, vector<64x1xf32>
    %c96 = arith.constant 96 : index
    %c0_4 = arith.constant 0 : index
    %3 = vector.load %arg2[%c96, %c0_4] : memref<128x1xf32, #tpu.memory_space<vmem>>, vector<32x1xf32>
    %4 = vector.broadcast %1 : vector<32x1xf32> to vector<32x8xf32>
    %5 = vector.broadcast %0 : vector<1x8xf32> to vector<32x8xf32>
    %6 = arith.mulf %4, %5 : vector<32x8xf32>
    %7 = tpu.iota {dimensions = array<i32: 0>} : vector<32x8xi32>
    %c16_i32 = arith.constant 16 : i32
    %8 = vector.broadcast %c16_i32 : i32 to vector<32x8xi32>
    %9 = arith.cmpi slt, %7, %8 : vector<32x8xi32>
    %10 = math.sin %6 : vector<32x8xf32>
    %11 = math.cos %6 : vector<32x8xf32>
    %12 = arith.select %9, %10, %11 : vector<32x8xi1>, vector<32x8xf32>
    %c0_5 = arith.constant 0 : index
    %c0_6 = arith.constant 0 : index
    %13 = vector.load %arg3[%c0_5, %c0_6] : memref<64x32xf32, #tpu.memory_space<vmem>>, vector<64x32xf32>
    %cst = arith.constant dense<0.000000e+00> : vector<64x8xf32>
    %14 = tpu.matmul %13, %12, %cst {dimension_numbers = #tpu.dot_dimension_numbers<[1], [0], [0], [1], [0, 0, 1, 1], [], []>} : vector<64x32xf32>, vector<32x8xf32>, vector<64x8xf32> -> vector<64x8xf32>
    %15 = vector.broadcast %2 : vector<64x1xf32> to vector<64x8xf32>
    %16 = arith.addf %14, %15 : vector<64x8xf32>
    %17 = arith.negf %16 : vector<64x8xf32>
    %18 = math.exp %17 : vector<64x8xf32>
    %cst_7 = arith.constant 1.000000e+00 : f32
    %19 = vector.broadcast %cst_7 : f32 to vector<64x8xf32>
    %20 = arith.addf %19, %18 : vector<64x8xf32>
    %21 = arith.divf %19, %20 : vector<64x8xf32>
    %22 = arith.mulf %16, %21 : vector<64x8xf32>
    %c0_8 = arith.constant 0 : index
    %c0_9 = arith.constant 0 : index
    %23 = vector.load %arg4[%c0_8, %c0_9] : memref<32x64xf32, #tpu.memory_space<vmem>>, vector<32x64xf32>
    %cst_10 = arith.constant dense<0.000000e+00> : vector<32x8xf32>
    %24 = tpu.matmul %23, %22, %cst_10 {dimension_numbers = #tpu.dot_dimension_numbers<[1], [0], [0], [1], [0, 0, 1, 1], [], []>} : vector<32x64xf32>, vector<64x8xf32>, vector<32x8xf32> -> vector<32x8xf32>
    %25 = vector.broadcast %3 : vector<32x1xf32> to vector<32x8xf32>
    %26 = arith.addf %24, %25 : vector<32x8xf32>
    %c0_11 = arith.constant 0 : index
    %c0_12 = arith.constant 0 : index
    %27 = vector.load %arg5[%c0_11, %c0_12] : memref<32x8xf32, #tpu.memory_space<vmem>>, vector<32x8xf32>
    tpu.vector_store %arg5[%c0_11, %c0_12], %26 {strides = array<i32>} : memref<32x8xf32, #tpu.memory_space<vmem>>, vector<32x8xf32>,
    return
  }
  func.func @transform_0(%arg0: i32) -> (i32, i32) {
    %c0_i32 = arith.constant 0 : i32
    %c0_i32_0 = arith.constant 0 : i32
    return %c0_i32, %arg0 : i32, i32
  }
  func.func @transform_1(%arg0: i32) -> (i32, i32) {
    %c0_i32 = arith.constant 0 : i32
    %c0_i32_0 = arith.constant 0 : i32
    %c0_i32_1 = arith.constant 0 : i32
    return %c0_i32, %c0_i32_0 : i32, i32
  }
  func.func @transform_2(%arg0: i32) -> (i32, i32) {
    %c0_i32 = arith.constant 0 : i32
    %c0_i32_0 = arith.constant 0 : i32
    %c0_i32_1 = arith.constant 0 : i32
    return %c0_i32, %c0_i32_0 : i32, i32
  }
  func.func @transform_3(%arg0: i32) -> (i32, i32) {
    %c0_i32 = arith.constant 0 : i32
    %c0_i32_0 = arith.constant 0 : i32
    %c0_i32_1 = arith.constant 0 : i32
    return %c0_i32, %c0_i32_0 : i32, i32
  }
  func.func @transform_4(%arg0: i32) -> (i32, i32) {
    %c0_i32 = arith.constant 0 : i32
    %c0_i32_0 = arith.constant 0 : i32
    return %c0_i32, %arg0 : i32, i32
  }
}

</mosaic_0001>

<llo_original>
// kernel: tpu_custom_call.1
$region0: #{tpu_custom_call.1}
  #allocation0 [shape = 'u32[]', space=smem, size = 0x4, offset = 0x4, fixed_abs, tag = 'smem constant byte address 0x4 - core index']
  #allocation1 [shape = 'u32[144,128]{1,0:T(1,128)}', space=vmem, size = 0x12000, scoped, tag = 'internal scratch']
  %s0 = inlined_call_operand.vmem [shape: f32[1,8], index: 0, kind: input, shape index: {}]
  %s1 = inlined_call_operand.vmem [shape: f32[128,1], index: 1, kind: input, shape index: {}]
  %s2 = inlined_call_operand.vmem [shape: f32[64,32], index: 2, kind: input, shape index: {}]
  %s3 = inlined_call_operand.vmem [shape: f32[32,64], index: 3, kind: input, shape index: {}]
  %s4 = inlined_call_operand.vmem [shape: f32[32,8], index: 4, kind: output, shape index: {}]
  %s5 = sld [smem:[#allocation0]]
  $region26: #{tpu_custom_call.1} parent=0
    _
  %s7 = ssub.s32 1, %s5
  %s8 = scalar_select 0, %s7, %s5
  // Predicated region
  $region2: #{tpu_custom_call.1} parent=0 // pred_check
    _
  $region3: #{tpu_custom_call.1} parent=0 // pred_check_branch
    %10 = sbr.rel (0) target = $region5
  $region4: #{tpu_custom_call.1} parent=0 // pred_region
    _
  $region5: #{tpu_custom_call.1} parent=0 // pred_fallthru
    _
  // Predicated region
  $region6: #{tpu_custom_call.1} parent=0 // pred_check
    _
  $region7: #{tpu_custom_call.1} parent=0 // pred_check_branch
    %12 = sbr.rel (0) target = $region9
  $region8: #{tpu_custom_call.1} parent=0 // pred_region
    _
  $region9: #{tpu_custom_call.1} parent=0 // pred_fallthru
    _
  // Predicated region
  $region10: #{tpu_custom_call.1} parent=0 // pred_check
    _
  $region11: #{tpu_custom_call.1} parent=0 // pred_check_branch
    %14 = sbr.rel (0) target = $region13
  $region12: #{tpu_custom_call.1} parent=0 // pred_region
    _
  $region13: #{tpu_custom_call.1} parent=0 // pred_fallthru
    _
  // Predicated region
  $region14: #{tpu_custom_call.1} parent=0 // pred_check
    _
  $region15: #{tpu_custom_call.1} parent=0 // pred_check_branch
    %16 = sbr.rel (0) target = $region17
  $region16: #{tpu_custom_call.1} parent=0 // pred_region
    _
  $region17: #{tpu_custom_call.1} parent=0 // pred_fallthru
    _
  %v17 = vld [vmem:[%s0] sm:$0x1]
  %v18 = vld [vmem:[%s1] sm:$0xff]
  %v19 = vld [vmem:[%s1 + $0x8] sm:$0xff]
  %v20 = vld [vmem:[%s1 + $0x10] sm:$0xff]
  %v21 = vld [vmem:[%s1 + $0x18] sm:$0xff]
  %v22 = vld [vmem:[%s1 + $0x20] sm:$0xff]
  %v23 = vld [vmem:[%s1 + $0x28] sm:$0xff]
  %v24 = vld [vmem:[%s1 + $0x30] sm:$0xff]
  %v25 = vld [vmem:[%s1 + $0x38] sm:$0xff]
  %v26 = vld [vmem:[%s1 + $0x40] sm:$0xff]
  %v27 = vld [vmem:[%s1 + $0x48] sm:$0xff]
  %v28 = vld [vmem:[%s1 + $0x50] sm:$0xff]
  %v29 = vld [vmem:[%s1 + $0x58] sm:$0xff]
  %v30 = vld [vmem:[%s1 + $0x60] sm:$0xff]
  %v31 = vld [vmem:[%s1 + $0x68] sm:$0xff]
  %v32 = vld [vmem:[%s1 + $0x70] sm:$0xff]
  %v33 = vld [vmem:[%s1 + $0x78] sm:$0xff]
  %35 = vset.pattern.permute.xlu0 0
  %36 = vperm.xlu0 %35, %v18
  %v37 = vpop.permute.xlu0 %36
  %40 = vset.pattern.permute.xlu0 0
  %41 = vperm.xlu0 %40, %v19
  %v42 = vpop.permute.xlu0 %41
  %45 = vset.pattern.permute.xlu0 0
  %46 = vperm.xlu0 %45, %v20
  %v47 = vpop.permute.xlu0 %46
  %50 = vset.pattern.permute.xlu0 0
  %51 = vperm.xlu0 %50, %v21
  %v52 = vpop.permute.xlu0 %51
  %v55 = vlaneseq
  %v56 = vshrl.u32 %v55, 7
  %v57 = vsub.s32 0, %v56
  %v58 = vrot.slane %v17, %v57
  %v60 = vmul.f32 %v37, %v58
  %v61 = vmul.f32 %v42, %v58
  %v62 = vmul.f32 %v47, %v58
  %v63 = vmul.f32 %v52, %v58
  %v64 = vlaneseq
  %v65 = vshrl.u32 %v64, 7
  %v66 = vadd.s32 %v65, 8
  %v67 = vadd.s32 %v65, 16
  %v68 = vadd.s32 %v65, 24
  %vm69 = vcmp.lt.s32.totalorder %v65, 16
  %vm70 = vcmp.lt.s32.totalorder %v66, 16
  %vm71 = vcmp.lt.s32.totalorder %v67, 16
  %vm72 = vcmp.lt.s32.totalorder %v68, 16
  %v73 = vand.u32 2147483647, %v60
  %vm74 = vcmp.le.f32.partialorder %v73, 0.7853982
  %vm75 = vcmp.lt.s32.totalorder %v60, 0
  %v76 = vand.u32 %v60, 2139095040
  %v77 = vshrl.u32 %v76, 23
  %v78 = vsub.s32 %v77, 127
  %v79 = vand.u32 2147483647, %v60
  %v80 = vand.u32 %v79, 8388607
  %v81 = vor.u32 %v80, 8388608
  %v82 = vsub.s32 0, %v81
  %v83 = vadd.s32 %v78, 1
  %vm84 = vcmp.gt.s32.totalorder %v83, 0
  %v85 = vsel %vm84, %v83, 0
  %v86 = vshrl.u32 %v85, 5
  %v87 = vand.u32 %v85, 31
  %v88 = vsub.s32 32, %v87
  %v89 = vshrl.u32 683565275, %v88
  %v90 = vshll.u32 683565275, %v87
  %v91 = vshrl.u32 2475754826, %v88
  %v92 = vor.u32 %v90, %v91
  %v93 = vshll.u32 2475754826, %v87
  %v94 = vshrl.u32 2131351028, %v88
  %v95 = vor.u32 %v93, %v94
  %v96 = vshll.u32 2131351028, %v87
  %v97 = vshrl.u32 2102212464, %v88
  %v98 = vor.u32 %v96, %v97
  %v99 = vshll.u32 2102212464, %v87
  %v100 = vshrl.u32 920167782, %v88
  %v101 = vor.u32 %v99, %v100
  %v102 = vshll.u32 920167782, %v87
  %v103 = vshrl.u32 1326507024, %v88
  %v104 = vor.u32 %v102, %v103
  %vm105 = vcmp.lt.s32.totalorder %v86, 1
  %vm106 = vcmp.lt.s32.totalorder %v86, 2
  %vm107 = vcmp.lt.s32.totalorder %v86, 3
  %vm108 = vcmp.lt.s32.totalorder %v86, 4
  %v109 = vsel %vm105, %v89, %v92
  %v110 = vsel %vm108, %v98, 2102212464
  %v111 = vsel %vm107, %v95, %v110
  %v112 = vsel %vm106, %v109, %v111
  %v113 = vsel %vm105, %v92, %v95
  %v114 = vsel %vm108, %v101, 920167782
  %v115 = vsel %vm107, %v98, %v114
  %v116 = vsel %vm106, %v113, %v115
  %v117 = vsel %vm105, %v95, %v98
  %v118 = vsel %vm108, %v104, 1326507024
  %v119 = vsel %vm107, %v101, %v118
  %v120 = vsel %vm106, %v117, %v119
  %v121 = vshll.u32 %v81, 8
  %v122 = vmul.u32.u64.compose %v121, %v120
  %v123 = vextract.low.u32 %v122
  %v124 = vextract.high.u32 %v122
  %v125 = vmul.u32.u64.compose %v121, %v116
  %v126 = vextract.low.u32 %v125
  %v127 = vextract.high.u32 %v125
  %v128 = vmul.u32 %v121, %v112
  %v129 = vadd.s32 %v124, %v126
  %vm130 = vc.u32 %v124, %v126
  %v131 = vadd.s32 %v127, 1
  %v132 = vsel %vm130, %v131, %v127
  %v133 = vadd.s32 %v128, %v132
  %v134 = vadd.s32 %v133, 536870912
  %v135 = vshrl.u32 %v134, 30
  %v136 = vshll.u32 %v135, 30
  %v137 = vsub.s32 %v133, %v136
  %vm138 = vcmp.lt.s32.totalorder %v137, 0
  %v139 = vsub.s32 0, %v137
  %v140 = vsel %vm138, %v139, %v137
  %v141 = vclz %v140
  %v142 = vsub.s32 %v141, 2
  %vm143 = vcmp.gt.s32.totalorder 0, %v142
  %v144 = vsel %vm143, 0, %v142
  %v145 = vsub.s32 32, %v144
  %v146 = vshll.u32 %v137, %v144
  %v147 = vshrl.u32 %v129, %v145
  %v148 = vor.u32 %v146, %v147
  %v149 = vsub.s32 4294967266, %v144
  %v150 = vadd.s32 %v149, 127
  %v151 = vshll.u32 %v150, 23
  %v152 = vor.u32 4788187, %v151
  %v153 = vand.u32 2147483647, %v152
  %v155 = vcvt.s32.f32 %v148
  %v156 = vmul.f32 %v155, %v153
  %v157 = vxor.u32 %v156, 2147483648
  %v158 = vsel %vm75, %v157, %v156
  %v159 = vsub.s32 4, %v135
  %v160 = vsel %vm75, %v159, %v135
  %v161 = vsel %vm74, %v60, %v158
  %v162 = vsel %vm74, 0, %v160
  %v163 = vcosq.f32.pop %v161
  %v164 = vsinq.f32.pop %v161
  %vm165 = vweird.f32 %v60
  %v166 = vadd.s32 %v162, 3
  %v167 = vand.u32 %v166, 3
  %vm168 = vcmp.lt.s32.totalorder %v167, 2
  %vm169 = vcmp.eq.s32.totalorder %v167, 0
  %v170 = vxor.u32 %v164, 2147483648
  %v171 = vsel %vm169, %v163, %v170
  %vm172 = vcmp.eq.s32.totalorder %v167, 2
  %v173 = vxor.u32 %v163, 2147483648
  %v174 = vsel %vm172, %v173, %v164
  %v175 = vsel %vm168, %v171, %v174
  %v176 = vsel %vm165, nan, %v175
  %v177 = vand.u32 2147483647, %v61
  %vm178 = vcmp.le.f32.partialorder %v177, 0.7853982
  %vm179 = vcmp.lt.s32.totalorder %v61, 0
  %v180 = vand.u32 %v61, 2139095040
  %v181 = vshrl.u32 %v180, 23
  %v182 = vsub.s32 %v181, 127
  %v183 = vand.u32 2147483647, %v61
  %v184 = vand.u32 %v183, 8388607
  %v185 = vor.u32 %v184, 8388608
  %v186 = vsub.s32 0, %v185
  %v187 = vadd.s32 %v182, 1
  %vm188 = vcmp.gt.s32.totalorder %v187, 0
  %v189 = vsel %vm188, %v187, 0
  %v190 = vshrl.u32 %v189, 5
  %v191 = vand.u32 %v189, 31
  %v192 = vsub.s32 32, %v191
  %v193 = vshrl.u32 683565275, %v192
  %v194 = vshll.u32 683565275, %v191
  %v195 = vshrl.u32 2475754826, %v192
  %v196 = vor.u32 %v194, %v195
  %v197 = vshll.u32 2475754826, %v191
  %v198 = vshrl.u32 2131351028, %v192
  %v199 = vor.u32 %v197, %v198
  %v200 = vshll.u32 2131351028, %v191
  %v201 = vshrl.u32 2102212464, %v192
  %v202 = vor.u32 %v200, %v201
  %v203 = vshll.u32 2102212464, %v191
  %v204 = vshrl.u32 920167782, %v192
  %v205 = vor.u32 %v203, %v204
  %v206 = vshll.u32 920167782, %v191
  %v207 = vshrl.u32 1326507024, %v192
  %v208 = vor.u32 %v206, %v207
  %vm209 = vcmp.lt.s32.totalorder %v190, 1
  %vm210 = vcmp.lt.s32.totalorder %v190, 2
  %vm211 = vcmp.lt.s32.totalorder %v190, 3
  %vm212 = vcmp.lt.s32.totalorder %v190, 4
  %v213 = vsel %vm209, %v193, %v196
  %v214 = vsel %vm212, %v202, 2102212464
  %v215 = vsel %vm211, %v199, %v214
  %v216 = vsel %vm210, %v213, %v215
  %v217 = vsel %vm209, %v196, %v199
  %v218 = vsel %vm212, %v205, 920167782
  %v219 = vsel %vm211, %v202, %v218
  %v220 = vsel %vm210, %v217, %v219
  %v221 = vsel %vm209, %v199, %v202
  %v222 = vsel %vm212, %v208, 1326507024
  %v223 = vsel %vm211, %v205, %v222
  %v224 = vsel %vm210, %v221, %v223
  %v225 = vshll.u32 %v185, 8
  %v226 = vmul.u32.u64.compose %v225, %v224
  %v227 = vextract.low.u32 %v226
  %v228 = vextract.high.u32 %v226
  %v229 = vmul.u32.u64.compose %v225, %v220
  %v230 = vextract.low.u32 %v229
  %v231 = vextract.high.u32 %v229
  %v232 = vmul.u32 %v225, %v216
  %v233 = vadd.s32 %v228, %v230
  %vm234 = vc.u32 %v228, %v230
  %v235 = vadd.s32 %v231, 1
  %v236 = vsel %vm234, %v235, %v231
  %v237 = vadd.s32 %v232, %v236
  %v238 = vadd.s32 %v237, 536870912
  %v239 = vshrl.u32 %v238, 30
  %v240 = vshll.u32 %v239, 30
  %v241 = vsub.s32 %v237, %v240
  %vm242 = vcmp.lt.s32.totalorder %v241, 0
  %v243 = vsub.s32 0, %v241
  %v244 = vsel %vm242, %v243, %v241
  %v245 = vclz %v244
  %v246 = vsub.s32 %v245, 2
  %vm247 = vcmp.gt.s32.totalorder 0, %v246
  %v248 = vsel %vm247, 0, %v246
  %v249 = vsub.s32 32, %v248
  %v250 = vshll.u32 %v241, %v248
  %v251 = vshrl.u32 %v233, %v249
  %v252 = vor.u32 %v250, %v251
  %v253 = vsub.s32 4294967266, %v248
  %v254 = vadd.s32 %v253, 127
  %v255 = vshll.u32 %v254, 23
  %v256 = vor.u32 4788187, %v255
  %v257 = vand.u32 2147483647, %v256
  %v259 = vcvt.s32.f32 %v252
  %v260 = vmul.f32 %v259, %v257
  %v261 = vxor.u32 %v260, 2147483648
  %v262 = vsel %vm179, %v261, %v260
  %v263 = vsub.s32 4, %v239
  %v264 = vsel %vm179, %v263, %v239
  %v265 = vsel %vm178, %v61, %v262
  %v266 = vsel %vm178, 0, %v264
  %v267 = vcosq.f32.pop %v265
  %v268 = vsinq.f32.pop %v265
  %vm269 = vweird.f32 %v61
  %v270 = vadd.s32 %v266, 3
  %v271 = vand.u32 %v270, 3
  %vm272 = vcmp.lt.s32.totalorder %v271, 2
  %vm273 = vcmp.eq.s32.totalorder %v271, 0
  %v274 = vxor.u32 %v268, 2147483648
  %v275 = vsel %vm273, %v267, %v274
  %vm276 = vcmp.eq.s32.totalorder %v271, 2
  %v277 = vxor.u32 %v267, 2147483648
  %v278 = vsel %vm276, %v277, %v268
  %v279 = vsel %vm272, %v275, %v278
  %v280 = vsel %vm269, nan, %v279
  %v281 = vand.u32 2147483647, %v62
  %vm282 = vcmp.le.f32.partialorder %v281, 0.7853982
  %vm283 = vcmp.lt.s32.totalorder %v62, 0
  %v284 = vand.u32 %v62, 2139095040
  %v285 = vshrl.u32 %v284, 23
  %v286 = vsub.s32 %v285, 127
  %v287 = vand.u32 2147483647, %v62
  %v288 = vand.u32 %v287, 8388607
  %v289 = vor.u32 %v288, 8388608
  %v290 = vsub.s32 0, %v289
  %v291 = vadd.s32 %v286, 1
  %vm292 = vcmp.gt.s32.totalorder %v291, 0
  %v293 = vsel %vm292, %v291, 0
  %v294 = vshrl.u32 %v293, 5
  %v295 = vand.u32 %v293, 31
  %v296 = vsub.s32 32, %v295
  %v297 = vshrl.u32 683565275, %v296
  %v298 = vshll.u32 683565275, %v295
  %v299 = vshrl.u32 2475754826, %v296
  %v300 = vor.u32 %v298, %v299
  %v301 = vshll.u32 2475754826, %v295
  %v302 = vshrl.u32 2131351028, %v296
  %v303 = vor.u32 %v301, %v302
  %v304 = vshll.u32 2131351028, %v295
  %v305 = vshrl.u32 2102212464, %v296
  %v306 = vor.u32 %v304, %v305
  %v307 = vshll.u32 2102212464, %v295
  %v308 = vshrl.u32 920167782, %v296
  %v309 = vor.u32 %v307, %v308
  %v310 = vshll.u32 920167782, %v295
  %v311 = vshrl.u32 1326507024, %v296
  %v312 = vor.u32 %v310, %v311
  %vm313 = vcmp.lt.s32.totalorder %v294, 1
  %vm314 = vcmp.lt.s32.totalorder %v294, 2
  %vm315 = vcmp.lt.s32.totalorder %v294, 3
  %vm316 = vcmp.lt.s32.totalorder %v294, 4
  %v317 = vsel %vm313, %v297, %v300
  %v318 = vsel %vm316, %v306, 2102212464
  %v319 = vsel %vm315, %v303, %v318
  %v320 = vsel %vm314, %v317, %v319
  %v321 = vsel %vm313, %v300, %v303
  %v322 = vsel %vm316, %v309, 920167782
  %v323 = vsel %vm315, %v306, %v322
  %v324 = vsel %vm314, %v321, %v323
  %v325 = vsel %vm313, %v303, %v306
  %v326 = vsel %vm316, %v312, 1326507024
  %v327 = vsel %vm315, %v309, %v326
  %v328 = vsel %vm314, %v325, %v327
  %v329 = vshll.u32 %v289, 8
  %v330 = vmul.u32.u64.compose %v329, %v328
  %v331 = vextract.low.u32 %v330
  %v332 = vextract.high.u32 %v330
  %v333 = vmul.u32.u64.compose %v329, %v324
  %v334 = vextract.low.u32 %v333
  %v335 = vextract.high.u32 %v333
  %v336 = vmul.u32 %v329, %v320
  %v337 = vadd.s32 %v332, %v334
  %vm338 = vc.u32 %v332, %v334
  %v339 = vadd.s32 %v335, 1
  %v340 = vsel %vm338, %v339, %v335
  %v341 = vadd.s32 %v336, %v340
  %v342 = vadd.s32 %v341, 536870912
  %v343 = vshrl.u32 %v342, 30
  %v344 = vshll.u32 %v343, 30
  %v345 = vsub.s32 %v341, %v344
  %vm346 = vcmp.lt.s32.totalorder %v345, 0
  %v347 = vsub.s32 0, %v345
  %v348 = vsel %vm346, %v347, %v345
  %v349 = vclz %v348
  %v350 = vsub.s32 %v349, 2
  %vm351 = vcmp.gt.s32.totalorder 0, %v350
  %v352 = vsel %vm351, 0, %v350
  %v353 = vsub.s32 32, %v352
  %v354 = vshll.u32 %v345, %v352
  %v355 = vshrl.u32 %v337, %v353
  %v356 = vor.u32 %v354, %v355
  %v357 = vsub.s32 4294967266, %v352
  %v358 = vadd.s32 %v357, 127
  %v359 = vshll.u32 %v358, 23
  %v360 = vor.u32 4788187, %v359
  %v361 = vand.u32 2147483647, %v360
  %v363 = vcvt.s32.f32 %v356
  %v364 = vmul.f32 %v363, %v361
  %v365 = vxor.u32 %v364, 2147483648
  %v366 = vsel %vm283, %v365, %v364
  %v367 = vsub.s32 4, %v343
  %v368 = vsel %vm283, %v367, %v343
  %v369 = vsel %vm282, %v62, %v366
  %v370 = vsel %vm282, 0, %v368
  %v371 = vcosq.f32.pop %v369
  %v372 = vsinq.f32.pop %v369
  %vm373 = vweird.f32 %v62
  %v374 = vadd.s32 %v370, 3
  %v375 = vand.u32 %v374, 3
  %vm376 = vcmp.lt.s32.totalorder %v375, 2
  %vm377 = vcmp.eq.s32.totalorder %v375, 0
  %v378 = vxor.u32 %v372, 2147483648
  %v379 = vsel %vm377, %v371, %v378
  %vm380 = vcmp.eq.s32.totalorder %v375, 2
  %v381 = vxor.u32 %v371, 2147483648
  %v382 = vsel %vm380, %v381, %v372
  %v383 = vsel %vm376, %v379, %v382
  %v384 = vsel %vm373, nan, %v383
  %v385 = vand.u32 2147483647, %v63
  %vm386 = vcmp.le.f32.partialorder %v385, 0.7853982
  %vm387 = vcmp.lt.s32.totalorder %v63, 0
  %v388 = vand.u32 %v63, 2139095040
  %v389 = vshrl.u32 %v388, 23
  %v390 = vsub.s32 %v389, 127
  %v391 = vand.u32 2147483647, %v63
  %v392 = vand.u32 %v391, 8388607
  %v393 = vor.u32 %v392, 8388608
  %v394 = vsub.s32 0, %v393
  %v395 = vadd.s32 %v390, 1
  %vm396 = vcmp.gt.s32.totalorder %v395, 0
  %v397 = vsel %vm396, %v395, 0
  %v398 = vshrl.u32 %v397, 5
  %v399 = vand.u32 %v397, 31
  %v400 = vsub.s32 32, %v399
  %v401 = vshrl.u32 683565275, %v400
  %v402 = vshll.u32 683565275, %v399
  %v403 = vshrl.u32 2475754826, %v400
  %v404 = vor.u32 %v402, %v403
  %v405 = vshll.u32 2475754826, %v399
  %v406 = vshrl.u32 2131351028, %v400
  %v407 = vor.u32 %v405, %v406
  %v408 = vshll.u32 2131351028, %v399
  %v409 = vshrl.u32 2102212464, %v400
  %v410 = vor.u32 %v408, %v409
  %v411 = vshll.u32 2102212464, %v399
  %v412 = vshrl.u32 920167782, %v400
  %v413 = vor.u32 %v411, %v412
  %v414 = vshll.u32 920167782, %v399
  %v415 = vshrl.u32 1326507024, %v400
  %v416 = vor.u32 %v414, %v415
  %vm417 = vcmp.lt.s32.totalorder %v398, 1
  %vm418 = vcmp.lt.s32.totalorder %v398, 2
  %vm419 = vcmp.lt.s32.totalorder %v398, 3
  %vm420 = vcmp.lt.s32.totalorder %v398, 4
  %v421 = vsel %vm417, %v401, %v404
  %v422 = vsel %vm420, %v410, 2102212464
  %v423 = vsel %vm419, %v407, %v422
  %v424 = vsel %vm418, %v421, %v423
  %v425 = vsel %vm417, %v404, %v407
  %v426 = vsel %vm420, %v413, 920167782
  %v427 = vsel %vm419, %v410, %v426
  %v428 = vsel %vm418, %v425, %v427
  %v429 = vsel %vm417, %v407, %v410
  %v430 = vsel %vm420, %v416, 1326507024
  %v431 = vsel %vm419, %v413, %v430
  %v432 = vsel %vm418, %v429, %v431
  %v433 = vshll.u32 %v393, 8
  %v434 = vmul.u32.u64.compose %v433, %v432
  %v435 = vextract.low.u32 %v434
  %v436 = vextract.high.u32 %v434
  %v437 = vmul.u32.u64.compose %v433, %v428
  %v438 = vextract.low.u32 %v437
  %v439 = vextract.high.u32 %v437
  %v440 = vmul.u32 %v433, %v424
  %v441 = vadd.s32 %v436, %v438
  %vm442 = vc.u32 %v436, %v438
  %v443 = vadd.s32 %v439, 1
  %v444 = vsel %vm442, %v443, %v439
  %v445 = vadd.s32 %v440, %v444
  %v446 = vadd.s32 %v445, 536870912
  %v447 = vshrl.u32 %v446, 30
  %v448 = vshll.u32 %v447, 30
  %v449 = vsub.s32 %v445, %v448
  %vm450 = vcmp.lt.s32.totalorder %v449, 0
  %v451 = vsub.s32 0, %v449
  %v452 = vsel %vm450, %v451, %v449
  %v453 = vclz %v452
  %v454 = vsub.s32 %v453, 2
  %vm455 = vcmp.gt.s32.totalorder 0, %v454
  %v456 = vsel %vm455, 0, %v454
  %v457 = vsub.s32 32, %v456
  %v458 = vshll.u32 %v449, %v456
  %v459 = vshrl.u32 %v441, %v457
  %v460 = vor.u32 %v458, %v459
  %v461 = vsub.s32 4294967266, %v456
  %v462 = vadd.s32 %v461, 127
  %v463 = vshll.u32 %v462, 23
  %v464 = vor.u32 4788187, %v463
  %v465 = vand.u32 2147483647, %v464
  %v467 = vcvt.s32.f32 %v460
  %v468 = vmul.f32 %v467, %v465
  %v469 = vxor.u32 %v468, 2147483648
  %v470 = vsel %vm387, %v469, %v468
  %v471 = vsub.s32 4, %v447
  %v472 = vsel %vm387, %v471, %v447
  %v473 = vsel %vm386, %v63, %v470
  %v474 = vsel %vm386, 0, %v472
  %v475 = vcosq.f32.pop %v473
  %v476 = vsinq.f32.pop %v473
  %vm477 = vweird.f32 %v63
  %v478 = vadd.s32 %v474, 3
  %v479 = vand.u32 %v478, 3
  %vm480 = vcmp.lt.s32.totalorder %v479, 2
  %vm481 = vcmp.eq.s32.totalorder %v479, 0
  %v482 = vxor.u32 %v476, 2147483648
  %v483 = vsel %vm481, %v475, %v482
  %vm484 = vcmp.eq.s32.totalorder %v479, 2
  %v485 = vxor.u32 %v475, 2147483648
  %v486 = vsel %vm484, %v485, %v476
  %v487 = vsel %vm480, %v483, %v486
  %v488 = vsel %vm477, nan, %v487
  %v489 = vand.u32 2147483647, %v60
  %vm490 = vcmp.le.f32.partialorder %v489, 0.7853982
  %vm491 = vcmp.lt.s32.totalorder %v60, 0
  %v492 = vand.u32 %v60, 2139095040
  %v493 = vshrl.u32 %v492, 23
  %v494 = vsub.s32 %v493, 127
  %v495 = vand.u32 2147483647, %v60
  %v496 = vand.u32 %v495, 8388607
  %v497 = vor.u32 %v496, 8388608
  %v498 = vsub.s32 0, %v497
  %v499 = vadd.s32 %v494, 1
  %vm500 = vcmp.gt.s32.totalorder %v499, 0
  %v501 = vsel %vm500, %v499, 0
  %v502 = vshrl.u32 %v501, 5
  %v503 = vand.u32 %v501, 31
  %v504 = vsub.s32 32, %v503
  %v505 = vshrl.u32 683565275, %v504
  %v506 = vshll.u32 683565275, %v503
  %v507 = vshrl.u32 2475754826, %v504
  %v508 = vor.u32 %v506, %v507
  %v509 = vshll.u32 2475754826, %v503
  %v510 = vshrl.u32 2131351028, %v504
  %v511 = vor.u32 %v509, %v510
  %v512 = vshll.u32 2131351028, %v503
  %v513 = vshrl.u32 2102212464, %v504
  %v514 = vor.u32 %v512, %v513
  %v515 = vshll.u32 2102212464, %v503
  %v516 = vshrl.u32 920167782, %v504
  %v517 = vor.u32 %v515, %v516
  %v518 = vshll.u32 920167782, %v503
  %v519 = vshrl.u32 1326507024, %v504
  %v520 = vor.u32 %v518, %v519
  %vm521 = vcmp.lt.s32.totalorder %v502, 1
  %vm522 = vcmp.lt.s32.totalorder %v502, 2
  %vm523 = vcmp.lt.s32.totalorder %v502, 3
  %vm524 = vcmp.lt.s32.totalorder %v502, 4
  %v525 = vsel %vm521, %v505, %v508
  %v526 = vsel %vm524, %v514, 2102212464
  %v527 = vsel %vm523, %v511, %v526
  %v528 = vsel %vm522, %v525, %v527
  %v529 = vsel %vm521, %v508, %v511
  %v530 = vsel %vm524, %v517, 920167782
  %v531 = vsel %vm523, %v514, %v530
  %v532 = vsel %vm522, %v529, %v531
  %v533 = vsel %vm521, %v511, %v514
  %v534 = vsel %vm524, %v520, 1326507024
  %v535 = vsel %vm523, %v517, %v534
  %v536 = vsel %vm522, %v533, %v535
  %v537 = vshll.u32 %v497, 8
  %v538 = vmul.u32.u64.compose %v537, %v536
  %v539 = vextract.low.u32 %v538
  %v540 = vextract.high.u32 %v538
  %v541 = vmul.u32.u64.compose %v537, %v532
  %v542 = vextract.low.u32 %v541
  %v543 = vextract.high.u32 %v541
  %v544 = vmul.u32 %v537, %v528
  %v545 = vadd.s32 %v540, %v542
  %vm546 = vc.u32 %v540, %v542
  %v547 = vadd.s32 %v543, 1
  %v548 = vsel %vm546, %v547, %v543
  %v549 = vadd.s32 %v544, %v548
  %v550 = vadd.s32 %v549, 536870912
  %v551 = vshrl.u32 %v550, 30
  %v552 = vshll.u32 %v551, 30
  %v553 = vsub.s32 %v549, %v552
  %vm554 = vcmp.lt.s32.totalorder %v553, 0
  %v555 = vsub.s32 0, %v553
  %v556 = vsel %vm554, %v555, %v553
  %v557 = vclz %v556
  %v558 = vsub.s32 %v557, 2
  %vm559 = vcmp.gt.s32.totalorder 0, %v558
  %v560 = vsel %vm559, 0, %v558
  %v561 = vsub.s32 32, %v560
  %v562 = vshll.u32 %v553, %v560
  %v563 = vshrl.u32 %v545, %v561
  %v564 = vor.u32 %v562, %v563
  %v565 = vsub.s32 4294967266, %v560
  %v566 = vadd.s32 %v565, 127
  %v567 = vshll.u32 %v566, 23
  %v568 = vor.u32 4788187, %v567
  %v569 = vand.u32 2147483647, %v568
  %v571 = vcvt.s32.f32 %v564
  %v572 = vmul.f32 %v571, %v569
  %v573 = vxor.u32 %v572, 2147483648
  %v574 = vsel %vm491, %v573, %v572
  %v575 = vsub.s32 4, %v551
  %v576 = vsel %vm491, %v575, %v551
  %v577 = vsel %vm490, %v60, %v574
  %v578 = vsel %vm490, 0, %v576
  %v579 = vcosq.f32.pop %v577
  %v580 = vsinq.f32.pop %v577
  %vm581 = vweird.f32 %v60
  %v582 = vand.u32 %v578, 3
  %vm583 = vcmp.lt.s32.totalorder %v582, 2
  %vm584 = vcmp.eq.s32.totalorder %v582, 0
  %v585 = vxor.u32 %v580, 2147483648
  %v586 = vsel %vm584, %v579, %v585
  %vm587 = vcmp.eq.s32.totalorder %v582, 2
  %v588 = vxor.u32 %v579, 2147483648
  %v589 = vsel %vm587, %v588, %v580
  %v590 = vsel %vm583, %v586, %v589
  %v591 = vsel %vm581, nan, %v590
  %v592 = vand.u32 2147483647, %v61
  %vm593 = vcmp.le.f32.partialorder %v592, 0.7853982
  %vm594 = vcmp.lt.s32.totalorder %v61, 0
  %v595 = vand.u32 %v61, 2139095040
  %v596 = vshrl.u32 %v595, 23
  %v597 = vsub.s32 %v596, 127
  %v598 = vand.u32 2147483647, %v61
  %v599 = vand.u32 %v598, 8388607
  %v600 = vor.u32 %v599, 8388608
  %v601 = vsub.s32 0, %v600
  %v602 = vadd.s32 %v597, 1
  %vm603 = vcmp.gt.s32.totalorder %v602, 0
  %v604 = vsel %vm603, %v602, 0
  %v605 = vshrl.u32 %v604, 5
  %v606 = vand.u32 %v604, 31
  %v607 = vsub.s32 32, %v606
  %v608 = vshrl.u32 683565275, %v607
  %v609 = vshll.u32 683565275, %v606
  %v610 = vshrl.u32 2475754826, %v607
  %v611 = vor.u32 %v609, %v610
  %v612 = vshll.u32 2475754826, %v606
  %v613 = vshrl.u32 2131351028, %v607
  %v614 = vor.u32 %v612, %v613
  %v615 = vshll.u32 2131351028, %v606
  %v616 = vshrl.u32 2102212464, %v607
  %v617 = vor.u32 %v615, %v616
  %v618 = vshll.u32 2102212464, %v606
  %v619 = vshrl.u32 920167782, %v607
  %v620 = vor.u32 %v618, %v619
  %v621 = vshll.u32 920167782, %v606
  %v622 = vshrl.u32 1326507024, %v607
  %v623 = vor.u32 %v621, %v622
  %vm624 = vcmp.lt.s32.totalorder %v605, 1
  %vm625 = vcmp.lt.s32.totalorder %v605, 2
  %vm626 = vcmp.lt.s32.totalorder %v605, 3
  %vm627 = vcmp.lt.s32.totalorder %v605, 4
  %v628 = vsel %vm624, %v608, %v611
  %v629 = vsel %vm627, %v617, 2102212464
  %v630 = vsel %vm626, %v614, %v629
  %v631 = vsel %vm625, %v628, %v630
  %v632 = vsel %vm624, %v611, %v614
  %v633 = vsel %vm627, %v620, 920167782
  %v634 = vsel %vm626, %v617, %v633
  %v635 = vsel %vm625, %v632, %v634
  %v636 = vsel %vm624, %v614, %v617
  %v637 = vsel %vm627, %v623, 1326507024
  %v638 = vsel %vm626, %v620, %v637
  %v639 = vsel %vm625, %v636, %v638
  %v640 = vshll.u32 %v600, 8
  %v641 = vmul.u32.u64.compose %v640, %v639
  %v642 = vextract.low.u32 %v641
  %v643 = vextract.high.u32 %v641
  %v644 = vmul.u32.u64.compose %v640, %v635
  %v645 = vextract.low.u32 %v644
  %v646 = vextract.high.u32 %v644
  %v647 = vmul.u32 %v640, %v631
  %v648 = vadd.s32 %v643, %v645
  %vm649 = vc.u32 %v643, %v645
  %v650 = vadd.s32 %v646, 1
  %v651 = vsel %vm649, %v650, %v646
  %v652 = vadd.s32 %v647, %v651
  %v653 = vadd.s32 %v652, 536870912
  %v654 = vshrl.u32 %v653, 30
  %v655 = vshll.u32 %v654, 30
  %v656 = vsub.s32 %v652, %v655
  %vm657 = vcmp.lt.s32.totalorder %v656, 0
  %v658 = vsub.s32 0, %v656
  %v659 = vsel %vm657, %v658, %v656
  %v660 = vclz %v659
  %v661 = vsub.s32 %v660, 2
  %vm662 = vcmp.gt.s32.totalorder 0, %v661
  %v663 = vsel %vm662, 0, %v661
  %v664 = vsub.s32 32, %v663
  %v665 = vshll.u32 %v656, %v663
  %v666 = vshrl.u32 %v648, %v664
  %v667 = vor.u32 %v665, %v666
  %v668 = vsub.s32 4294967266, %v663
  %v669 = vadd.s32 %v668, 127
  %v670 = vshll.u32 %v669, 23
  %v671 = vor.u32 4788187, %v670
  %v672 = vand.u32 2147483647, %v671
  %v674 = vcvt.s32.f32 %v667
  %v675 = vmul.f32 %v674, %v672
  %v676 = vxor.u32 %v675, 2147483648
  %v677 = vsel %vm594, %v676, %v675
  %v678 = vsub.s32 4, %v654
  %v679 = vsel %vm594, %v678, %v654
  %v680 = vsel %vm593, %v61, %v677
  %v681 = vsel %vm593, 0, %v679
  %v682 = vcosq.f32.pop %v680
  %v683 = vsinq.f32.pop %v680
  %vm684 = vweird.f32 %v61
  %v685 = vand.u32 %v681, 3
  %vm686 = vcmp.lt.s32.totalorder %v685, 2
  %vm687 = vcmp.eq.s32.totalorder %v685, 0
  %v688 = vxor.u32 %v683, 2147483648
  %v689 = vsel %vm687, %v682, %v688
  %vm690 = vcmp.eq.s32.totalorder %v685, 2
  %v691 = vxor.u32 %v682, 2147483648
  %v692 = vsel %vm690, %v691, %v683
  %v693 = vsel %vm686, %v689, %v692
  %v694 = vsel %vm684, nan, %v693
  %v695 = vand.u32 2147483647, %v62
  %vm696 = vcmp.le.f32.partialorder %v695, 0.7853982
  %vm697 = vcmp.lt.s32.totalorder %v62, 0
  %v698 = vand.u32 %v62, 2139095040
  %v699 = vshrl.u32 %v698, 23
  %v700 = vsub.s32 %v699, 127
  %v701 = vand.u32 2147483647, %v62
  %v702 = vand.u32 %v701, 8388607
  %v703 = vor.u32 %v702, 8388608
  %v704 = vsub.s32 0, %v703
  %v705 = vadd.s32 %v700, 1
  %vm706 = vcmp.gt.s32.totalorder %v705, 0
  %v707 = vsel %vm706, %v705, 0
  %v708 = vshrl.u32 %v707, 5
  %v709 = vand.u32 %v707, 31
  %v710 = vsub.s32 32, %v709
  %v711 = vshrl.u32 683565275, %v710
  %v712 = vshll.u32 683565275, %v709
  %v713 = vshrl.u32 2475754826, %v710
  %v714 = vor.u32 %v712, %v713
  %v715 = vshll.u32 2475754826, %v709
  %v716 = vshrl.u32 2131351028, %v710
  %v717 = vor.u32 %v715, %v716
  %v718 = vshll.u32 2131351028, %v709
  %v719 = vshrl.u32 2102212464, %v710
  %v720 = vor.u32 %v718, %v719
  %v721 = vshll.u32 2102212464, %v709
  %v722 = vshrl.u32 920167782, %v710
  %v723 = vor.u32 %v721, %v722
  %v724 = vshll.u32 920167782, %v709
  %v725 = vshrl.u32 1326507024, %v710
  %v726 = vor.u32 %v724, %v725
  %vm727 = vcmp.lt.s32.totalorder %v708, 1
  %vm728 = vcmp.lt.s32.totalorder %v708, 2
  %vm729 = vcmp.lt.s32.totalorder %v708, 3
  %vm730 = vcmp.lt.s32.totalorder %v708, 4
  %v731 = vsel %vm727, %v711, %v714
  %v732 = vsel %vm730, %v720, 2102212464
  %v733 = vsel %vm729, %v717, %v732
  %v734 = vsel %vm728, %v731, %v733
  %v735 = vsel %vm727, %v714, %v717
  %v736 = vsel %vm730, %v723, 920167782
  %v737 = vsel %vm729, %v720, %v736
  %v738 = vsel %vm728, %v735, %v737
  %v739 = vsel %vm727, %v717, %v720
  %v740 = vsel %vm730, %v726, 1326507024
  %v741 = vsel %vm729, %v723, %v740
  %v742 = vsel %vm728, %v739, %v741
  %v743 = vshll.u32 %v703, 8
  %v744 = vmul.u32.u64.compose %v743, %v742
  %v745 = vextract.low.u32 %v744
  %v746 = vextract.high.u32 %v744
  %v747 = vmul.u32.u64.compose %v743, %v738
  %v748 = vextract.low.u32 %v747
  %v749 = vextract.high.u32 %v747
  %v750 = vmul.u32 %v743, %v734
  %v751 = vadd.s32 %v746, %v748
  %vm752 = vc.u32 %v746, %v748
  %v753 = vadd.s32 %v749, 1
  %v754 = vsel %vm752, %v753, %v749
  %v755 = vadd.s32 %v750, %v754
  %v756 = vadd.s32 %v755, 536870912
  %v757 = vshrl.u32 %v756, 30
  %v758 = vshll.u32 %v757, 30
  %v759 = vsub.s32 %v755, %v758
  %vm760 = vcmp.lt.s32.totalorder %v759, 0
  %v761 = vsub.s32 0, %v759
  %v762 = vsel %vm760, %v761, %v759
  %v763 = vclz %v762
  %v764 = vsub.s32 %v763, 2
  %vm765 = vcmp.gt.s32.totalorder 0, %v764
  %v766 = vsel %vm765, 0, %v764
  %v767 = vsub.s32 32, %v766
  %v768 = vshll.u32 %v759, %v766
  %v769 = vshrl.u32 %v751, %v767
  %v770 = vor.u32 %v768, %v769
  %v771 = vsub.s32 4294967266, %v766
  %v772 = vadd.s32 %v771, 127
  %v773 = vshll.u32 %v772, 23
  %v774 = vor.u32 4788187, %v773
  %v775 = vand.u32 2147483647, %v774
  %v777 = vcvt.s32.f32 %v770
  %v778 = vmul.f32 %v777, %v775
  %v779 = vxor.u32 %v778, 2147483648
  %v780 = vsel %vm697, %v779, %v778
  %v781 = vsub.s32 4, %v757
  %v782 = vsel %vm697, %v781, %v757
  %v783 = vsel %vm696, %v62, %v780
  %v784 = vsel %vm696, 0, %v782
  %v785 = vcosq.f32.pop %v783
  %v786 = vsinq.f32.pop %v783
  %vm787 = vweird.f32 %v62
  %v788 = vand.u32 %v784, 3
  %vm789 = vcmp.lt.s32.totalorder %v788, 2
  %vm790 = vcmp.eq.s32.totalorder %v788, 0
  %v791 = vxor.u32 %v786, 2147483648
  %v792 = vsel %vm790, %v785, %v791
  %vm793 = vcmp.eq.s32.totalorder %v788, 2
  %v794 = vxor.u32 %v785, 2147483648
  %v795 = vsel %vm793, %v794, %v786
  %v796 = vsel %vm789, %v792, %v795
  %v797 = vsel %vm787, nan, %v796
  %v798 = vand.u32 2147483647, %v63
  %vm799 = vcmp.le.f32.partialorder %v798, 0.7853982
  %vm800 = vcmp.lt.s32.totalorder %v63, 0
  %v801 = vand.u32 %v63, 2139095040
  %v802 = vshrl.u32 %v801, 23
  %v803 = vsub.s32 %v802, 127
  %v804 = vand.u32 2147483647, %v63
  %v805 = vand.u32 %v804, 8388607
  %v806 = vor.u32 %v805, 8388608
  %v807 = vsub.s32 0, %v806
  %v808 = vadd.s32 %v803, 1
  %vm809 = vcmp.gt.s32.totalorder %v808, 0
  %v810 = vsel %vm809, %v808, 0
  %v811 = vshrl.u32 %v810, 5
  %v812 = vand.u32 %v810, 31
  %v813 = vsub.s32 32, %v812
  %v814 = vshrl.u32 683565275, %v813
  %v815 = vshll.u32 683565275, %v812
  %v816 = vshrl.u32 2475754826, %v813
  %v817 = vor.u32 %v815, %v816
  %v818 = vshll.u32 2475754826, %v812
  %v819 = vshrl.u32 2131351028, %v813
  %v820 = vor.u32 %v818, %v819
  %v821 = vshll.u32 2131351028, %v812
  %v822 = vshrl.u32 2102212464, %v813
  %v823 = vor.u32 %v821, %v822
  %v824 = vshll.u32 2102212464, %v812
  %v825 = vshrl.u32 920167782, %v813
  %v826 = vor.u32 %v824, %v825
  %v827 = vshll.u32 920167782, %v812
  %v828 = vshrl.u32 1326507024, %v813
  %v829 = vor.u32 %v827, %v828
  %vm830 = vcmp.lt.s32.totalorder %v811, 1
  %vm831 = vcmp.lt.s32.totalorder %v811, 2
  %vm832 = vcmp.lt.s32.totalorder %v811, 3
  %vm833 = vcmp.lt.s32.totalorder %v811, 4
  %v834 = vsel %vm830, %v814, %v817
  %v835 = vsel %vm833, %v823, 2102212464
  %v836 = vsel %vm832, %v820, %v835
  %v837 = vsel %vm831, %v834, %v836
  %v838 = vsel %vm830, %v817, %v820
  %v839 = vsel %vm833, %v826, 920167782
  %v840 = vsel %vm832, %v823, %v839
  %v841 = vsel %vm831, %v838, %v840
  %v842 = vsel %vm830, %v820, %v823
  %v843 = vsel %vm833, %v829, 1326507024
  %v844 = vsel %vm832, %v826, %v843
  %v845 = vsel %vm831, %v842, %v844
  %v846 = vshll.u32 %v806, 8
  %v847 = vmul.u32.u64.compose %v846, %v845
  %v848 = vextract.low.u32 %v847
  %v849 = vextract.high.u32 %v847
  %v850 = vmul.u32.u64.compose %v846, %v841
  %v851 = vextract.low.u32 %v850
  %v852 = vextract.high.u32 %v850
  %v853 = vmul.u32 %v846, %v837
  %v854 = vadd.s32 %v849, %v851
  %vm855 = vc.u32 %v849, %v851
  %v856 = vadd.s32 %v852, 1
  %v857 = vsel %vm855, %v856, %v852
  %v858 = vadd.s32 %v853, %v857
  %v859 = vadd.s32 %v858, 536870912
  %v860 = vshrl.u32 %v859, 30
  %v861 = vshll.u32 %v860, 30
  %v862 = vsub.s32 %v858, %v861
  %vm863 = vcmp.lt.s32.totalorder %v862, 0
  %v864 = vsub.s32 0, %v862
  %v865 = vsel %vm863, %v864, %v862
  %v866 = vclz %v865
  %v867 = vsub.s32 %v866, 2
  %vm868 = vcmp.gt.s32.totalorder 0, %v867
  %v869 = vsel %vm868, 0, %v867
  %v870 = vsub.s32 32, %v869
  %v871 = vshll.u32 %v862, %v869
  %v872 = vshrl.u32 %v854, %v870
  %v873 = vor.u32 %v871, %v872
  %v874 = vsub.s32 4294967266, %v869
  %v875 = vadd.s32 %v874, 127
  %v876 = vshll.u32 %v875, 23
  %v877 = vor.u32 4788187, %v876
  %v878 = vand.u32 2147483647, %v877
  %v880 = vcvt.s32.f32 %v873
  %v881 = vmul.f32 %v880, %v878
  %v882 = vxor.u32 %v881, 2147483648
  %v883 = vsel %vm800, %v882, %v881
  %v884 = vsub.s32 4, %v860
  %v885 = vsel %vm800, %v884, %v860
  %v886 = vsel %vm799, %v63, %v883
  %v887 = vsel %vm799, 0, %v885
  %v888 = vcosq.f32.pop %v886
  %v889 = vsinq.f32.pop %v886
  %vm890 = vweird.f32 %v63
  %v891 = vand.u32 %v887, 3
  %vm892 = vcmp.lt.s32.totalorder %v891, 2
  %vm893 = vcmp.eq.s32.totalorder %v891, 0
  %v894 = vxor.u32 %v889, 2147483648
  %v895 = vsel %vm893, %v888, %v894
  %vm896 = vcmp.eq.s32.totalorder %v891, 2
  %v897 = vxor.u32 %v888, 2147483648
  %v898 = vsel %vm896, %v897, %v889
  %v899 = vsel %vm892, %v895, %v898
  %v900 = vsel %vm890, nan, %v899
  %v901 = vsel %vm69, %v176, %v591
  %v902 = vsel %vm70, %v280, %v694
  %v903 = vsel %vm71, %v384, %v797
  %v904 = vsel %vm72, %v488, %v900
  %v905 = vld [vmem:[%s2] sm:$0xff]
  %v906 = vld [vmem:[%s2 + $0x8] sm:$0xff]
  %v907 = vld [vmem:[%s2 + $0x10] sm:$0xff]
  %v908 = vld [vmem:[%s2 + $0x18] sm:$0xff]
  %v909 = vld [vmem:[%s2 + $0x20] sm:$0xff]
  %v910 = vld [vmem:[%s2 + $0x28] sm:$0xff]
  %v911 = vld [vmem:[%s2 + $0x30] sm:$0xff]
  %v912 = vld [vmem:[%s2 + $0x38] sm:$0xff]
  %914 = vset.pattern.permute.xlu0 0
  %915 = vperm.xlu0 %914, %v22
  %v916 = vpop.permute.xlu0 %915
  %919 = vset.pattern.permute.xlu0 0
  %920 = vperm.xlu0 %919, %v23
  %v921 = vpop.permute.xlu0 %920
  %924 = vset.pattern.permute.xlu0 0
  %925 = vperm.xlu0 %924, %v24
  %v926 = vpop.permute.xlu0 %925
  %929 = vset.pattern.permute.xlu0 0
  %930 = vperm.xlu0 %929, %v25
  %v931 = vpop.permute.xlu0 %930
  %934 = vset.pattern.permute.xlu0 0
  %935 = vperm.xlu0 %934, %v26
  %v936 = vpop.permute.xlu0 %935
  %939 = vset.pattern.permute.xlu0 0
  %940 = vperm.xlu0 %939, %v27
  %v941 = vpop.permute.xlu0 %940
  %944 = vset.pattern.permute.xlu0 0
  %945 = vperm.xlu0 %944, %v28
  %v946 = vpop.permute.xlu0 %945
  %949 = vset.pattern.permute.xlu0 0
  %950 = vperm.xlu0 %949, %v29
  %v951 = vpop.permute.xlu0 %950
  %vm953 = vcmask 261120
  %v955 = vsel %vm953, %v905, 0
  %v958 = vsel %vm953, %v906, 0
  %v961 = vsel %vm953, %v907, 0
  %v964 = vsel %vm953, %v908, 0
  %v967 = vsel %vm953, %v909, 0
  %v970 = vsel %vm953, %v910, 0
  %v973 = vsel %vm953, %v911, 0
  %v976 = vsel %vm953, %v912, 0
  %978 = vmatprep.subr.mxu0 0.0
  %979 = vmatpush1.msra.mxu0 0.0
  %980 = vmatprep.subr.mxu0 0.0
  %981 = vmatpush1.msra.mxu0 0.0
  %982 = vmatprep.subr.mxu0 0.0
  %983 = vmatpush1.msra.mxu0 0.0
  %984 = vmatprep.subr.mxu0 0.0
  %985 = vmatpush1.msra.mxu0 0.0
  %986 = vmatprep.subr.mxu0 0.0
  %987 = vmatpush1.msra.mxu0 0.0
  %988 = vmatprep.subr.mxu0 0.0
  %989 = vmatpush1.msra.mxu0 0.0
  %990 = vmatprep.subr.mxu0 0.0
  %991 = vmatpush1.msra.mxu0 0.0
  %992 = vmatprep.subr.mxu0 0.0
  %993 = vmatpush1.msra.mxu0 0.0
  %994 = vmatprep.subr.mxu0 0.0
  %995 = vmatpush1.msra.mxu0 0.0
  %996 = vmatprep.subr.mxu0 0.0
  %997 = vmatpush1.msra.mxu0 0.0
  %998 = vmatprep.subr.mxu0 0.0
  %999 = vmatpush1.msra.mxu0 0.0
  %1000 = vmatprep.subr.mxu0 0.0
  %1001 = vmatpush1.msra.mxu0 0.0
  %1002 = vmatprep.subr.mxu0 0.0
  %1003 = vmatpush1.msra.mxu0 %v904
  %1004 = vmatprep.subr.mxu0 0.0
  %1005 = vmatpush1.msra.mxu0 %v903
  %1006 = vmatprep.subr.mxu0 0.0
  %1007 = vmatpush1.msra.mxu0 %v902
  %1008 = vmatprep.subr.mxu0 0.0
  %1009 = vmatpush1.msra.mxu0 %v901
  %1010 = vmatprep.subr.mxu0 0.0
  %1011 = vmatpush2.msra.mxu0 0.0
  %1012 = vmatprep.subr.mxu0 0.0
  %1013 = vmatpush2.msra.mxu0 0.0
  %1014 = vmatprep.subr.mxu0 0.0
  %1015 = vmatpush2.msra.mxu0 0.0
  %1016 = vmatprep.subr.mxu0 0.0
  %1017 = vmatpush2.msra.mxu0 0.0
  %1018 = vmatprep.subr.mxu0 0.0
  %1019 = vmatpush2.msra.mxu0 0.0
  %1020 = vmatprep.subr.mxu0 0.0
  %1021 = vmatpush2.msra.mxu0 0.0
  %1022 = vmatprep.subr.mxu0 0.0
  %1023 = vmatpush2.msra.mxu0 0.0
  %1024 = vmatprep.subr.mxu0 0.0
  %1025 = vmatpush2.msra.mxu0 0.0
  %1026 = vmatprep.subr.mxu0 0.0
  %1027 = vmatpush2.msra.mxu0 0.0
  %1028 = vmatprep.subr.mxu0 0.0
  %1029 = vmatpush2.msra.mxu0 0.0
  %1030 = vmatprep.subr.mxu0 0.0
  %1031 = vmatpush2.msra.mxu0 0.0
  %1032 = vmatprep.subr.mxu0 0.0
  %1033 = vmatpush2.msra.mxu0 0.0
  %1034 = vmatprep.subr.mxu0 0.0
  %1035 = vmatpush2.msra.mxu0 0.0
  %1036 = vmatprep.subr.mxu0 0.0
  %1037 = vmatpush2.msra.mxu0 0.0
  %1038 = vmatprep.subr.mxu0 0.0
  %1039 = vmatpush2.msra.mxu0 0.0
  %1040 = vmatprep.subr.mxu0 0.0
  %1041 = vmatpush2.msra.mxu0 0.0
  %1042 = vmatprep.mubr.f32.mxu0 0.0
  %1043 = vmatmul.mubr.f32.gmra.mxu0 %v955
  %v1044 = vpop.f32.mrf.mxu0
  %v1045 = vadd.f32 %v916, %v1044
  %v1046 = vpop.f32.mrf.mxu0
  %1047 = vmatprep.mubr.f32.mxu0 0.0
  %1048 = vmatmul.mubr.f32.gmra.mxu0 %v958
  %v1049 = vpop.f32.mrf.mxu0
  %v1050 = vadd.f32 %v921, %v1049
  %v1051 = vpop.f32.mrf.mxu0
  %1052 = vmatprep.mubr.f32.mxu0 0.0
  %1053 = vmatmul.mubr.f32.gmra.mxu0 %v961
  %v1054 = vpop.f32.mrf.mxu0
  %v1055 = vadd.f32 %v926, %v1054
  %v1056 = vpop.f32.mrf.mxu0
  %1057 = vmatprep.mubr.f32.mxu0 0.0
  %1058 = vmatmul.mubr.f32.gmra.mxu0 %v964
  %v1059 = vpop.f32.mrf.mxu0
  %v1060 = vadd.f32 %v931, %v1059
  %v1061 = vpop.f32.mrf.mxu0
  %1062 = vmatprep.mubr.f32.mxu0 0.0
  %1063 = vmatmul.mubr.f32.gmra.mxu0 %v967
  %v1064 = vpop.f32.mrf.mxu0
  %v1065 = vadd.f32 %v936, %v1064
  %v1066 = vpop.f32.mrf.mxu0
  %1067 = vmatprep.mubr.f32.mxu0 0.0
  %1068 = vmatmul.mubr.f32.gmra.mxu0 %v970
  %v1069 = vpop.f32.mrf.mxu0
  %v1070 = vadd.f32 %v941, %v1069
  %v1071 = vpop.f32.mrf.mxu0
  %1072 = vmatprep.mubr.f32.mxu0 0.0
  %1073 = vmatmul.mubr.f32.gmra.mxu0 %v973
  %v1074 = vpop.f32.mrf.mxu0
  %v1075 = vadd.f32 %v946, %v1074
  %v1076 = vpop.f32.mrf.mxu0
  %1077 = vmatprep.mubr.f32.mxu0 0.0
  %1078 = vmatmul.mubr.f32.gmra.mxu0 %v976
  %v1079 = vpop.f32.mrf.mxu0
  %v1080 = vadd.f32 %v951, %v1079
  %v1081 = vpop.f32.mrf.mxu0
  %1082 = vdwg.mxu0
  %v1083 = vxor.u32 %v1045, 2147483648
  %v1084 = vxor.u32 %v1050, 2147483648
  %v1085 = vxor.u32 %v1055, 2147483648
  %v1086 = vxor.u32 %v1060, 2147483648
  %v1087 = vxor.u32 %v1065, 2147483648
  %v1088 = vxor.u32 %v1070, 2147483648
  %v1089 = vxor.u32 %v1075, 2147483648
  %v1090 = vxor.u32 %v1080, 2147483648
  %v1091 = vmul.f32 %v1083, 1.442695
  %v1092 = vpow.pop %v1091
  %v1093 = vmul.f32 %v1084, 1.442695
  %v1094 = vpow.pop %v1093
  %v1095 = vmul.f32 %v1085, 1.442695
  %v1096 = vpow.pop %v1095
  %v1097 = vmul.f32 %v1086, 1.442695
  %v1098 = vpow.pop %v1097
  %v1099 = vmul.f32 %v1087, 1.442695
  %v1100 = vpow.pop %v1099
  %v1101 = vmul.f32 %v1088, 1.442695
  %v1102 = vpow.pop %v1101
  %v1103 = vmul.f32 %v1089, 1.442695
  %v1104 = vpow.pop %v1103
  %v1105 = vmul.f32 %v1090, 1.442695
  %v1106 = vpow.pop %v1105
  %v1107 = vadd.f32 %v1092, 1.0
  %v1108 = vadd.f32 %v1094, 1.0
  %v1109 = vadd.f32 %v1096, 1.0
  %v1110 = vadd.f32 %v1098, 1.0
  %v1111 = vadd.f32 %v1100, 1.0
  %v1112 = vadd.f32 %v1102, 1.0
  %v1113 = vadd.f32 %v1104, 1.0
  %v1114 = vadd.f32 %v1106, 1.0
  %v1115 = vrcp.pop %v1107
  %v1116 = vmul.f32 1.0, %v1115
  %v1117 = vrcp.pop %v1108
  %v1118 = vmul.f32 1.0, %v1117
  %v1119 = vrcp.pop %v1109
  %v1120 = vmul.f32 1.0, %v1119
  %v1121 = vrcp.pop %v1110
  %v1122 = vmul.f32 1.0, %v1121
  %v1123 = vrcp.pop %v1111
  %v1124 = vmul.f32 1.0, %v1123
  %v1125 = vrcp.pop %v1112
  %v1126 = vmul.f32 1.0, %v1125
  %v1127 = vrcp.pop %v1113
  %v1128 = vmul.f32 1.0, %v1127
  %v1129 = vrcp.pop %v1114
  %v1130 = vmul.f32 1.0, %v1129
  %v1131 = vmul.f32 %v1045, %v1116
  %v1132 = vmul.f32 %v1050, %v1118
  %v1133 = vmul.f32 %v1055, %v1120
  %v1134 = vmul.f32 %v1060, %v1122
  %v1135 = vmul.f32 %v1065, %v1124
  %v1136 = vmul.f32 %v1070, %v1126
  %v1137 = vmul.f32 %v1075, %v1128
  %v1138 = vmul.f32 %v1080, %v1130
  %v1139 = vld [vmem:[%s3] sm:$0xff]
  %v1140 = vld [vmem:[%s3 + $0x8] sm:$0xff]
  %v1141 = vld [vmem:[%s3 + $0x10] sm:$0xff]
  %v1142 = vld [vmem:[%s3 + $0x18] sm:$0xff]
  %1144 = vset.pattern.permute.xlu0 0
  %1145 = vperm.xlu0 %1144, %v30
  %v1146 = vpop.permute.xlu0 %1145
  %1149 = vset.pattern.permute.xlu0 0
  %1150 = vperm.xlu0 %1149, %v31
  %v1151 = vpop.permute.xlu0 %1150
  %1154 = vset.pattern.permute.xlu0 0
  %1155 = vperm.xlu0 %1154, %v32
  %v1156 = vpop.permute.xlu0 %1155
  %1159 = vset.pattern.permute.xlu0 0
  %1160 = vperm.xlu0 %1159, %v33
  %v1161 = vpop.permute.xlu0 %1160
  %vm1163 = vcmask 523264
  %v1165 = vsel %vm1163, %v1139, 0
  %v1168 = vsel %vm1163, %v1140, 0
  %v1171 = vsel %vm1163, %v1141, 0
  %v1174 = vsel %vm1163, %v1142, 0
  %1176 = vmatprep.subr.mxu0 0.0
  %1177 = vmatpush1.msra.mxu0 0.0
  %1178 = vmatprep.subr.mxu0 0.0
  %1179 = vmatpush1.msra.mxu0 0.0
  %1180 = vmatprep.subr.mxu0 0.0
  %1181 = vmatpush1.msra.mxu0 0.0
  %1182 = vmatprep.subr.mxu0 0.0
  %1183 = vmatpush1.msra.mxu0 0.0
  %1184 = vmatprep.subr.mxu0 0.0
  %1185 = vmatpush1.msra.mxu0 0.0
  %1186 = vmatprep.subr.mxu0 0.0
  %1187 = vmatpush1.msra.mxu0 0.0
  %1188 = vmatprep.subr.mxu0 0.0
  %1189 = vmatpush1.msra.mxu0 0.0
  %1190 = vmatprep.subr.mxu0 0.0
  %1191 = vmatpush1.msra.mxu0 0.0
  %1192 = vmatprep.subr.mxu0 0.0
  %1193 = vmatpush1.msra.mxu0 %v1138
  %1194 = vmatprep.subr.mxu0 0.0
  %1195 = vmatpush1.msra.mxu0 %v1137
  %1196 = vmatprep.subr.mxu0 0.0
  %1197 = vmatpush1.msra.mxu0 %v1136
  %1198 = vmatprep.subr.mxu0 0.0
  %1199 = vmatpush1.msra.mxu0 %v1135
  %1200 = vmatprep.subr.mxu0 0.0
  %1201 = vmatpush1.msra.mxu0 %v1134
  %1202 = vmatprep.subr.mxu0 0.0
  %1203 = vmatpush1.msra.mxu0 %v1133
  %1204 = vmatprep.subr.mxu0 0.0
  %1205 = vmatpush1.msra.mxu0 %v1132
  %1206 = vmatprep.subr.mxu0 0.0
  %1207 = vmatpush1.msra.mxu0 %v1131
  %1208 = vmatprep.subr.mxu0 0.0
  %1209 = vmatpush2.msra.mxu0 0.0
  %1210 = vmatprep.subr.mxu0 0.0
  %1211 = vmatpush2.msra.mxu0 0.0
  %1212 = vmatprep.subr.mxu0 0.0
  %1213 = vmatpush2.msra.mxu0 0.0
  %1214 = vmatprep.subr.mxu0 0.0
  %1215 = vmatpush2.msra.mxu0 0.0
  %1216 = vmatprep.subr.mxu0 0.0
  %1217 = vmatpush2.msra.mxu0 0.0
  %1218 = vmatprep.subr.mxu0 0.0
  %1219 = vmatpush2.msra.mxu0 0.0
  %1220 = vmatprep.subr.mxu0 0.0
  %1221 = vmatpush2.msra.mxu0 0.0
  %1222 = vmatprep.subr.mxu0 0.0
  %1223 = vmatpush2.msra.mxu0 0.0
  %1224 = vmatprep.subr.mxu0 0.0
  %1225 = vmatpush2.msra.mxu0 0.0
  %1226 = vmatprep.subr.mxu0 0.0
  %1227 = vmatpush2.msra.mxu0 0.0
  %1228 = vmatprep.subr.mxu0 0.0
  %1229 = vmatpush2.msra.mxu0 0.0
  %1230 = vmatprep.subr.mxu0 0.0
  %1231 = vmatpush2.msra.mxu0 0.0
  %1232 = vmatprep.subr.mxu0 0.0
  %1233 = vmatpush2.msra.mxu0 0.0
  %1234 = vmatprep.subr.mxu0 0.0
  %1235 = vmatpush2.msra.mxu0 0.0
  %1236 = vmatprep.subr.mxu0 0.0
  %1237 = vmatpush2.msra.mxu0 0.0
  %1238 = vmatprep.subr.mxu0 0.0
  %1239 = vmatpush2.msra.mxu0 0.0
  %1240 = vmatprep.mubr.f32.mxu0 0.0
  %1241 = vmatmul.mubr.f32.gmra.mxu0 %v1165
  %v1242 = vpop.f32.mrf.mxu0
  %v1243 = vadd.f32 %v1146, %v1242
  %v1244 = vpop.f32.mrf.mxu0
  %1245 = vmatprep.mubr.f32.mxu0 0.0
  %1246 = vmatmul.mubr.f32.gmra.mxu0 %v1168
  %v1247 = vpop.f32.mrf.mxu0
  %v1248 = vadd.f32 %v1151, %v1247
  %v1249 = vpop.f32.mrf.mxu0
  %1250 = vmatprep.mubr.f32.mxu0 0.0
  %1251 = vmatmul.mubr.f32.gmra.mxu0 %v1171
  %v1252 = vpop.f32.mrf.mxu0
  %v1253 = vadd.f32 %v1156, %v1252
  %v1254 = vpop.f32.mrf.mxu0
  %1255 = vmatprep.mubr.f32.mxu0 0.0
  %1256 = vmatmul.mubr.f32.gmra.mxu0 %v1174
  %v1257 = vpop.f32.mrf.mxu0
  %v1258 = vadd.f32 %v1161, %v1257
  %v1259 = vpop.f32.mrf.mxu0
  %1260 = vdwg.mxu0
  %vm1261 = vcmask 64512
  %1262 = vst.msk [vmem:[%s4] sm:$0xff] %vm1261, %v1243
  %1263 = vst.msk [vmem:[%s4 + $0x8] sm:$0xff] %vm1261, %v1248
  %1264 = vst.msk [vmem:[%s4 + $0x10] sm:$0xff] %vm1261, %v1253
  %1265 = vst.msk [vmem:[%s4 + $0x18] sm:$0xff] %vm1261, %v1258
  // Predicated region
  $region18: #{tpu_custom_call.1} parent=0 // pred_check
    _
  $region19: #{tpu_custom_call.1} parent=0 // pred_check_branch
    %1267 = sbr.rel (0) target = $region21
  $region20: #{tpu_custom_call.1} parent=0 // pred_region
    _
  $region21: #{tpu_custom_call.1} parent=0 // pred_fallthru
    _
  // Predicated region
  $region22: #{tpu_custom_call.1} parent=0 // pred_check
    _
  $region23: #{tpu_custom_call.1} parent=0 // pred_check_branch
    %1269 = sbr.rel (0) target = $region25
  $region24: #{tpu_custom_call.1} parent=0 // pred_region
    _
  $region25: #{tpu_custom_call.1} parent=0 // pred_fallthru
    _

</llo_original>
